<compile_context>
chip_gen: v7x
topology: tpu7x:2x2x1
jax: 0.10.0
libtpu: 0.0.40
codegen_flags: <defaults>
</compile_context>

<pallas_src>
import math

import jax
import jax.numpy as jnp
import numpy as np
from jax.experimental import pallas as pl
from jax.experimental.pallas import tpu as pltpu

LN_EPS = 1e-5          # nn.LayerNorm default
_LANE = 128
_SUBLANE = 8
_MAX_TB = 4096                          # batch-tile row cap (review: raise from 512)
_TILE_BUDGET = 18 * 1024 * 1024         # budget for all per-step VMEM buffers
_VMEM_LIMIT = 32 * 1024 * 1024          # scoped VMEM limit (v5e default is 16 MiB)


def _round_up(n, m):
    return ((n + m - 1) // m) * m


# ----------------------------------------------------------------------------
# Kernels
# ----------------------------------------------------------------------------
def _cls_head_kernel(x_ref, gamma_ref, beta_ref, w_ref, b_ref, o_ref):
    """convolution=False path: LayerNorm + Linear on CLS-token rows.

    x_ref:     (TB, E)   CLS token per example (selected by the BlockSpec)
    gamma_ref: (1, E)    LayerNorm weight (f32)
    beta_ref:  (1, E)    LayerNorm bias   (f32)
    w_ref:     (E, Cp)   Linear weight (param_dtype), classifier dim padded to 128
    b_ref:     (1, Cp)   Linear bias (f32)
    o_ref:     (TB, Cp)
    """
    x = x_ref[...].astype(jnp.float32)                       # small (TB, E) tile
    inv_e = 1.0 / x.shape[-1]
    # fused one-pass LayerNorm statistics
    s1 = jnp.sum(x, axis=-1, keepdims=True)
    s2 = jnp.sum(x * x, axis=-1, keepdims=True)
    mean = s1 * inv_e
    var = jnp.maximum(s2 * inv_e - mean * mean, 0.0)
    xn = (x - mean) * jax.lax.rsqrt(var + LN_EPS)
    xn = xn * gamma_ref[...] + beta_ref[...]
    out = jnp.dot(xn.astype(w_ref.dtype), w_ref[...],
                  preferred_element_type=jnp.float32)
    o_ref[...] = (out + b_ref[...]).astype(o_ref.dtype)


def _attn_pool_head_kernel(x_ref, pw_ref, pb_ref, gamma_ref, beta_ref,
                           w_ref, b_ref, o_ref):
    """convolution=True path: attention pooling over tokens, then LN + Linear.

    x_ref:  (TB, N, E)  input dtype (NOT upcast as a whole tile)
    pw_ref: (E, 1)      attention_pool weight column (param_dtype)
    pb_ref: (1, 1)      attention_pool bias (f32)
    gamma/beta: (1, E), w: (E, Cp), b: (1, Cp), o: (TB, Cp)
    """
    x = x_ref[...]                                            # (TB, N, E)
    tb, n, e = x.shape
    pw = pw_ref[...].astype(x.dtype)                          # (E, 1), tiny cast

    # Attention scores on the MXU: one (TB*N, E) @ (E, 1) matmul, f32 acc.
    s = jnp.dot(x.reshape(tb * n, e), pw,
                preferred_element_type=jnp.float32).reshape(tb, n, 1)
    s = s + pb_ref[0, 0]

    # Softmax over tokens (axis=1), kept in the (TB, N, 1) layout (no relayout).
    s = s - jnp.max(s, axis=1, keepdims=True)
    p = jnp.exp(s)
    attn = p * pl.reciprocal(jnp.sum(p, axis=1, keepdims=True), approx=True)

    # Token contraction as broadcast-multiply + sublane-sum (VPU/XLU); avoids
    # TB independent M=1 MXU matmuls (worst possible MXU shape).
    pooled = jnp.sum(attn.astype(x.dtype) * x, axis=1).astype(jnp.float32)  # (TB, E)

    # Fused one-pass LayerNorm on the pooled vector.
    inv_e = 1.0 / e
    s1 = jnp.sum(pooled, axis=-1, keepdims=True)
    s2 = jnp.sum(pooled * pooled, axis=-1, keepdims=True)
    mean = s1 * inv_e
    var = jnp.maximum(s2 * inv_e - mean * mean, 0.0)
    xn = (pooled - mean) * jax.lax.rsqrt(var + LN_EPS)
    xn = xn * gamma_ref[...] + beta_ref[...]

    out = jnp.dot(xn.astype(w_ref.dtype), w_ref[...],
                  preferred_element_type=jnp.float32)
    o_ref[...] = (out + b_ref[...]).astype(o_ref.dtype)


# ----------------------------------------------------------------------------
# Wrapper
# ----------------------------------------------------------------------------
class ClassificationHeadPallas:
    """Deterministically-initialized Pallas version of ClassificationHead."""

    def __init__(self, emb_size=128, n_classes=100, convolution=False, seed=0,
                 param_dtype=jnp.bfloat16):
        self.emb_size = emb_size
        self.n_classes = n_classes
        self.convolution = convolution
        self.param_dtype = param_dtype
        self.c_pad = _round_up(n_classes, _LANE)   # lane-dense classifier dim

        key = jax.random.PRNGKey(seed)
        k_w, k_b, k_pw, k_pb = jax.random.split(key, 4)

        # nn.LayerNorm defaults: weight=1, bias=0 (kept f32: stats stay f32).
        self.gamma = jnp.ones((1, emb_size), jnp.float32)
        self.beta = jnp.zeros((1, emb_size), jnp.float32)

        # nn.Linear(emb_size, n_classes): U(-1/sqrt(E), 1/sqrt(E)); classifier
        # dim zero-padded up to a multiple of 128 (sliced off in __call__).
        bound = 1.0 / math.sqrt(emb_size)
        w = jax.random.uniform(k_w, (emb_size, n_classes), jnp.float32, -bound, bound)
        b = jax.random.uniform(k_b, (1, n_classes), jnp.float32, -bound, bound)
        self.w = jnp.zeros((emb_size, self.c_pad), param_dtype
                           ).at[:, :n_classes].set(w.astype(param_dtype))
        self.b = jnp.zeros((1, self.c_pad), jnp.float32).at[:, :n_classes].set(b)

        if convolution:
            # attention_pool = nn.Linear(emb_size, 1); stored as an (E, 1)
            # column so the in-kernel scores matmul needs no reshape.
            pw = jax.random.uniform(k_pw, (emb_size, 1), jnp.float32, -bound, bound)
            self.pool_w = pw.astype(param_dtype)
            self.pool_b = jax.random.uniform(k_pb, (1, 1), jnp.float32, -bound, bound)

    # ------------------------------------------------------------------
    def _pick_batch_tile(self, B, bytes_per_example_in, in_copies):
        """Pick the batch-tile rows so all per-step VMEM buffers fit the budget.

        in_copies: resident copies of the input tile (2 pipeline buffers, +1 for
        the in-kernel attn*x product intermediate on the conv path).
        """
        pit = jnp.dtype(self.param_dtype).itemsize
        # Double-buffered constant operands (weight, bias, LN params, pool params).
        const_bytes = 2 * (self.emb_size * self.c_pad * pit          # classifier W
                           + self.c_pad * 4                          # bias
                           + 2 * self.emb_size * 4                   # gamma, beta
                           + self.emb_size * pit + 4)                # pool W, pool b
        budget = max(_TILE_BUDGET - const_bytes, 2 * 1024 * 1024)
        denom = in_copies * bytes_per_example_in + 2 * self.c_pad * 4  # in + out bufs
        tb = max(_SUBLANE, (budget // denom) // _SUBLANE * _SUBLANE)
        tb = min(tb, _MAX_TB)
        if B <= _SUBLANE:
            return B                      # single block equal to the full batch dim
        # Keep at least 2 grid steps so v7x's second TensorCore is never idle.
        tb = min(tb, _round_up((B + 1) // 2, _SUBLANE))
        return tb

    # ------------------------------------------------------------------
    def __call__(self, x):
        B, N, E = x.shape
        assert E == self.emb_size
        in_itemsize = jnp.dtype(x.dtype).itemsize

        w_spec = pl.BlockSpec((E, self.c_pad), lambda i: (0, 0))
        b_spec = pl.BlockSpec((1, self.c_pad), lambda i: (0, 0))
        g_spec = pl.BlockSpec((1, E), lambda i: (0, 0))
        cparams = pltpu.CompilerParams(dimension_semantics=("parallel",),
                                       vmem_limit_bytes=_VMEM_LIMIT)

        if not self.convolution:
            tb = self._pick_batch_tile(B, E * in_itemsize, in_copies=2)
            if E % _LANE == 0:
                # Free row-major reshape: the (tb, E) block at column-block 0
                # DMAs exactly the CLS token of each example from HBM.
                x_in = x.reshape(B, N * E)
            else:
                # TODO(synk): lane-unaligned emb_size falls back to a JAX-side CLS slice.
                x_in = x[:, 0, :]
            x_spec = pl.BlockSpec((tb, E), lambda i: (i, 0))
            out = pl.pallas_call(
                _cls_head_kernel,
                grid=(pl.cdiv(B, tb),),
                in_specs=[x_spec, g_spec, g_spec, w_spec, b_spec],
                out_specs=pl.BlockSpec((tb, self.c_pad), lambda i: (i, 0)),
                out_shape=jax.ShapeDtypeStruct((B, self.c_pad), jnp.float32),
                compiler_params=cparams,
            )(x_in, self.gamma, self.beta, self.w, self.b)
        else:
            tb = self._pick_batch_tile(B, N * E * in_itemsize, in_copies=3)
            x_spec = pl.BlockSpec((tb, N, E), lambda i: (i, 0, 0))
            pw_spec = pl.BlockSpec((E, 1), lambda i: (0, 0))
            pb_spec = pl.BlockSpec((1, 1), lambda i: (0, 0))
            out = pl.pallas_call(
                _attn_pool_head_kernel,
                grid=(pl.cdiv(B, tb),),
                in_specs=[x_spec, pw_spec, pb_spec, g_spec, g_spec, w_spec, b_spec],
                out_specs=pl.BlockSpec((tb, self.c_pad), lambda i: (i, 0)),
                out_shape=jax.ShapeDtypeStruct((B, self.c_pad), jnp.float32),
                compiler_params=cparams,
            )(x, self.pool_w, self.pool_b, self.gamma, self.beta, self.w, self.b)

        return out[:, :self.n_classes]


# ----------------------------------------------------------------------------
# Pure-JAX reference (for correctness check)
# ----------------------------------------------------------------------------
def _ref_forward(head, x):
    w = head.w[:, :head.n_classes].astype(jnp.float32)
    b = head.b[:, :head.n_classes]
    xf = x.astype(jnp.float32)
    if not head.convolution:
        xt = xf[:, 0, :]
    else:
        scores = xf @ head.pool_w.astype(jnp.float32) + head.pool_b[0, 0]   # (B,N,1)
        attn = jax.nn.softmax(scores, axis=1)
        xt = jnp.einsum('bnt,bne->bte', attn, xf)[:, 0, :]                  # t == 1
    mean = jnp.mean(xt, axis=-1, keepdims=True)
    var = jnp.mean((xt - mean) ** 2, axis=-1, keepdims=True)
    xn = (xt - mean) / jnp.sqrt(var + LN_EPS) * head.gamma + head.beta
    return xn @ w + b


if __name__ == "__main__":
    B, N, E, C = 2, 8, 128, 100
    x = jax.random.normal(jax.random.PRNGKey(0), (B, N, E), jnp.float32)
    # Tolerance covers bf16 activations fed to the MXU and the approx softmax
    # reciprocal (~1e-3-level differences vs the pure-f32 reference).
    TOL = dict(rtol=1e-2, atol=1e-2)

    # convolution=False path (default)
    head = ClassificationHeadPallas(emb_size=E, n_classes=C, convolution=False)
    y = jax.block_until_ready(head(x))
    assert y.shape == (B, C)
    np.testing.assert_allclose(np.asarray(y), np.asarray(_ref_forward(head, x)), **TOL)

    # convolution=True path (attention pooling)
    head_c = ClassificationHeadPallas(emb_size=E, n_classes=C, convolution=True)
    y_c = jax.block_until_ready(head_c(x))
    assert y_c.shape == (B, C)
    np.testing.assert_allclose(np.asarray(y_c), np.asarray(_ref_forward(head_c, x)), **TOL)

    # Ragged batch (B not a multiple of the tile): exercises multi-step grid with
    # a partial edge block and no input padding.
    B2 = 20
    x2 = jax.random.normal(jax.random.PRNGKey(0), (B2, N, E), jnp.float32)
    y2 = jax.block_until_ready(head(x2))
    assert y2.shape == (B2, C)
    np.testing.assert_allclose(np.asarray(y2), np.asarray(_ref_forward(head, x2)), **TOL)
    y2c = jax.block_until_ready(head_c(x2))
    np.testing.assert_allclose(np.asarray(y2c), np.asarray(_ref_forward(head_c, x2)), **TOL)

    print("KERNEL_OK")
</pallas_src>

<mosaic_0001>
module attributes {stable_mosaic.version = 11 : i64} {
  func.func @_cls_head_kernel(%arg0: i32, %arg1: memref<2x128xf32, #tpu.memory_space<vmem>>, %arg2: memref<1x128xf32, #tpu.memory_space<vmem>>, %arg3: memref<1x128xf32, #tpu.memory_space<vmem>>, %arg4: memref<128x128xbf16, #tpu.memory_space<vmem>>, %arg5: memref<1x128xf32, #tpu.memory_space<vmem>>, %arg6: memref<2x128xf32, #tpu.memory_space<vmem>>) attributes {dimension_semantics = [#tpu.dimension_semantics<parallel>], iteration_bounds = array<i64: 1>, scalar_prefetch = 0 : i64, scratch_operands = 0 : i64, tpu.core_type = #tpu.core_type<tc>, window_params = [{transform_indices = @transform_0, window_bounds = array<i64: 2, 128>}, {pipeline_mode = #tpu.pipeline_mode<synchronous>, transform_indices = @transform_1, window_bounds = array<i64: 1, 128>}, {pipeline_mode = #tpu.pipeline_mode<synchronous>, transform_indices = @transform_2, window_bounds = array<i64: 1, 128>}, {pipeline_mode = #tpu.pipeline_mode<synchronous>, transform_indices = @transform_3, window_bounds = array<i64: 128, 128>}, {pipeline_mode = #tpu.pipeline_mode<synchronous>, transform_indices = @transform_4, window_bounds = array<i64: 1, 128>}, {transform_indices = @transform_5, window_bounds = array<i64: 2, 128>}]} {
    %c0 = arith.constant 0 : index
    %c0_0 = arith.constant 0 : index
    %0 = vector.load %arg1[%c0, %c0_0] : memref<2x128xf32, #tpu.memory_space<vmem>>, vector<2x128xf32>
    %cst = arith.constant dense<0.000000e+00> : vector<2xf32>
    %1 = vector.multi_reduction <add>, %0, %cst [1] : vector<2x128xf32> to vector<2xf32>
    %2 = vector.shape_cast %1 : vector<2xf32> to vector<2x1xf32>
    %3 = arith.mulf %0, %0 : vector<2x128xf32>
    %cst_1 = arith.constant dense<0.000000e+00> : vector<2xf32>
    %4 = vector.multi_reduction <add>, %3, %cst_1 [1] : vector<2x128xf32> to vector<2xf32>
    %5 = vector.shape_cast %4 : vector<2xf32> to vector<2x1xf32>
    %cst_2 = arith.constant 7.812500e-03 : f32
    %6 = vector.broadcast %cst_2 : f32 to vector<2x1xf32>
    %7 = arith.mulf %2, %6 : vector<2x1xf32>
    %cst_3 = arith.constant 7.812500e-03 : f32
    %8 = vector.broadcast %cst_3 : f32 to vector<2x1xf32>
    %9 = arith.mulf %5, %8 : vector<2x1xf32>
    %10 = arith.mulf %7, %7 : vector<2x1xf32>
    %11 = arith.subf %9, %10 : vector<2x1xf32>
    %cst_4 = arith.constant 0.000000e+00 : f32
    %12 = vector.broadcast %cst_4 : f32 to vector<2x1xf32>
    %13 = arith.maximumf %11, %12 : vector<2x1xf32>
    %14 = vector.broadcast %7 : vector<2x1xf32> to vector<2x128xf32>
    %15 = arith.subf %0, %14 : vector<2x128xf32>
    %cst_5 = arith.constant 9.99999974E-6 : f32
    %16 = vector.broadcast %cst_5 : f32 to vector<2x1xf32>
    %17 = arith.addf %13, %16 : vector<2x1xf32>
    %18 = math.rsqrt %17 : vector<2x1xf32>
    %19 = vector.broadcast %18 : vector<2x1xf32> to vector<2x128xf32>
    %20 = arith.mulf %15, %19 : vector<2x128xf32>
    %c0_6 = arith.constant 0 : index
    %c0_7 = arith.constant 0 : index
    %21 = vector.load %arg2[%c0_6, %c0_7] : memref<1x128xf32, #tpu.memory_space<vmem>>, vector<1x128xf32>
    %22 = vector.broadcast %21 : vector<1x128xf32> to vector<2x128xf32>
    %23 = arith.mulf %20, %22 : vector<2x128xf32>
    %c0_8 = arith.constant 0 : index
    %c0_9 = arith.constant 0 : index
    %24 = vector.load %arg3[%c0_8, %c0_9] : memref<1x128xf32, #tpu.memory_space<vmem>>, vector<1x128xf32>
    %25 = vector.broadcast %24 : vector<1x128xf32> to vector<2x128xf32>
    %26 = arith.addf %23, %25 : vector<2x128xf32>
    %27 = arith.truncf %26 : vector<2x128xf32> to vector<2x128xbf16>
    %c0_10 = arith.constant 0 : index
    %c0_11 = arith.constant 0 : index
    %28 = vector.load %arg4[%c0_10, %c0_11] : memref<128x128xbf16, #tpu.memory_space<vmem>>, vector<128x128xbf16>
    %cst_12 = arith.constant dense<0.000000e+00> : vector<2x128xf32>
    %29 = tpu.matmul %27, %28, %cst_12 {dimension_numbers = #tpu.dot_dimension_numbers<[1], [0], [0], [1], [0, 0, 1, 1], [], []>} : vector<2x128xbf16>, vector<128x128xbf16>, vector<2x128xf32> -> vector<2x128xf32>
    %c0_13 = arith.constant 0 : index
    %c0_14 = arith.constant 0 : index
    %30 = vector.load %arg5[%c0_13, %c0_14] : memref<1x128xf32, #tpu.memory_space<vmem>>, vector<1x128xf32>
    %31 = vector.broadcast %30 : vector<1x128xf32> to vector<2x128xf32>
    %32 = arith.addf %29, %31 : vector<2x128xf32>
    %c0_15 = arith.constant 0 : index
    %c0_16 = arith.constant 0 : index
    %33 = vector.load %arg6[%c0_15, %c0_16] : memref<2x128xf32, #tpu.memory_space<vmem>>, vector<2x128xf32>
    tpu.vector_store %arg6[%c0_15, %c0_16], %32 {strides = array<i32>} : memref<2x128xf32, #tpu.memory_space<vmem>>, vector<2x128xf32>,
    return
  }
  func.func @transform_0(%arg0: i32) -> (i32, i32) {
    %c0_i32 = arith.constant 0 : i32
    %c0_i32_0 = arith.constant 0 : i32
    return %arg0, %c0_i32 : i32, i32
  }
  func.func @transform_1(%arg0: i32) -> (i32, i32) {
    %c0_i32 = arith.constant 0 : i32
    %c0_i32_0 = arith.constant 0 : i32
    %c0_i32_1 = arith.constant 0 : i32
    return %c0_i32, %c0_i32_0 : i32, i32
  }
  func.func @transform_2(%arg0: i32) -> (i32, i32) {
    %c0_i32 = arith.constant 0 : i32
    %c0_i32_0 = arith.constant 0 : i32
    %c0_i32_1 = arith.constant 0 : i32
    return %c0_i32, %c0_i32_0 : i32, i32
  }
  func.func @transform_3(%arg0: i32) -> (i32, i32) {
    %c0_i32 = arith.constant 0 : i32
    %c0_i32_0 = arith.constant 0 : i32
    %c0_i32_1 = arith.constant 0 : i32
    return %c0_i32, %c0_i32_0 : i32, i32
  }
  func.func @transform_4(%arg0: i32) -> (i32, i32) {
    %c0_i32 = arith.constant 0 : i32
    %c0_i32_0 = arith.constant 0 : i32
    %c0_i32_1 = arith.constant 0 : i32
    return %c0_i32, %c0_i32_0 : i32, i32
  }
  func.func @transform_5(%arg0: i32) -> (i32, i32) {
    %c0_i32 = arith.constant 0 : i32
    %c0_i32_0 = arith.constant 0 : i32
    return %arg0, %c0_i32 : i32, i32
  }
}

</mosaic_0001>

<llo_original>
// kernel: tpu_custom_call.1
$region0: #{tpu_custom_call.1}
  #allocation0 [shape = 'u32[]', space=smem, size = 0x4, offset = 0x4, fixed_abs, tag = 'smem constant byte address 0x4 - core index']
  #allocation1 [shape = 'u32[144,128]{1,0:T(1,128)}', space=vmem, size = 0x12000, scoped, tag = 'internal scratch']
  %s0 = inlined_call_operand.hbm [shape: f32[2,1024], index: 0, kind: input, shape index: {}]
  %s1 = inlined_call_operand.vmem [shape: f32[1,128], index: 1, kind: input, shape index: {}]
  %s2 = inlined_call_operand.vmem [shape: f32[1,128], index: 2, kind: input, shape index: {}]
  %s3 = inlined_call_operand.hbm [shape: bf16[128,128], index: 3, kind: input, shape index: {}]
  %s4 = inlined_call_operand.vmem [shape: f32[1,128], index: 4, kind: input, shape index: {}]
  %s5 = inlined_call_operand.hbm [shape: f32[2,128], index: 5, kind: output, shape index: {}]
  %s6 = sld [smem:[#allocation0]]
  $region38: #{tpu_custom_call.1} parent=0
    _
  %s8 = ssub.s32 1, %s6
  %s9 = scalar_select 0, %s8, %s6
  $region1: #{tpu_custom_call.1} parent=0
    #allocation2 [shape = 'u8[1024]{0}', space=vmem, size = 0x400, scoped, tag = 'input window, operand 0, single buffered']
    #allocation3 [shape = 's32[1]{0}', space=sflag, size = 0x4, scoped, tag = 'scoped memory for tpu_custom_call.1']
    #allocation4 [shape = 's32[1]{0}', space=sflag, size = 0x4, scoped, tag = 'scoped memory for tpu_custom_call.1']
    #allocation5 [shape = 'u8[32768]{0}', space=vmem, size = 0x8000, scoped, tag = 'input window, operand 3, single buffered']
    #allocation6 [shape = 's32[1]{0}', space=sflag, size = 0x4, scoped, tag = 'scoped memory for tpu_custom_call.1']
    #allocation7 [shape = 'u8[1024]{0}', space=vmem, size = 0x400, scoped, tag = 'output window, operand 0, single buffered']
    %10 = vsyncpa [#allocation3], 0
    %11 = vsyncpa [#allocation6], 0
    %12 = vsyncpa [#allocation4], 0
    // Predicated region
    $region2: #{tpu_custom_call.1} parent=1 // pred_check
      _
    $region3: #{tpu_custom_call.1} parent=1 // pred_check_branch
      %14 = sbr.rel (0) target = $region5
    $region4: #{tpu_custom_call.1} parent=1 // pred_region
      %s16 = ssub.s32 32, 32
      %17 = vsyncadd [#allocation3], %s16
      %s19 = sshll.u32 [#allocation2], 4
      %s20 = int_to_ptr.vmem [resolvable:$true] %s19
      %22 = dma.hbm_to_vmem [thread:$0]  %s0, 32, %s20, [#allocation3]
    $region5: #{tpu_custom_call.1} parent=1 // pred_fallthru
      _
    // Predicated region
    $region6: #{tpu_custom_call.1} parent=1 // pred_check
      _
    $region7: #{tpu_custom_call.1} parent=1 // pred_check_branch
      %24 = sbr.rel (0) target = $region9
    $region8: #{tpu_custom_call.1} parent=1 // pred_region
      _
    $region9: #{tpu_custom_call.1} parent=1 // pred_fallthru
      _
    // Predicated region
    $region10: #{tpu_custom_call.1} parent=1 // pred_check
      _
    $region11: #{tpu_custom_call.1} parent=1 // pred_check_branch
      %26 = sbr.rel (0) target = $region13
    $region12: #{tpu_custom_call.1} parent=1 // pred_region
      _
    $region13: #{tpu_custom_call.1} parent=1 // pred_fallthru
      _
    // Predicated region
    $region14: #{tpu_custom_call.1} parent=1 // pred_check
      _
    $region15: #{tpu_custom_call.1} parent=1 // pred_check_branch
      %28 = sbr.rel (0) target = $region17
    $region16: #{tpu_custom_call.1} parent=1 // pred_region
      %s30 = ssub.s32 1024, 1024
      %31 = vsyncadd [#allocation6], %s30
      %s32 = sshll.u32 [#allocation5], 4
      %s33 = int_to_ptr.vmem [resolvable:$true] %s32
      %38 = dma.hbm_to_vmem [thread:$0]  %s3, 1024, %s33, [#allocation6], 64, 64, 4
    $region17: #{tpu_custom_call.1} parent=1 // pred_fallthru
      _
    // Predicated region
    $region18: #{tpu_custom_call.1} parent=1 // pred_check
      _
    $region19: #{tpu_custom_call.1} parent=1 // pred_check_branch
      %40 = sbr.rel (0) target = $region21
    $region20: #{tpu_custom_call.1} parent=1 // pred_region
      _
    $region21: #{tpu_custom_call.1} parent=1 // pred_fallthru
      _
    // Predicated region
    $region22: #{tpu_custom_call.1} parent=1 // pred_check
      _
    $region23: #{tpu_custom_call.1} parent=1 // pred_check_branch
      %42 = sbr.rel (0) target = $region25
    $region24: #{tpu_custom_call.1} parent=1 // pred_region
      %43 = dma.done [#allocation3], 32
    $region25: #{tpu_custom_call.1} parent=1 // pred_fallthru
      _
    // Predicated region
    $region26: #{tpu_custom_call.1} parent=1 // pred_check
      _
    $region27: #{tpu_custom_call.1} parent=1 // pred_check_branch
      %45 = sbr.rel (0) target = $region29
    $region28: #{tpu_custom_call.1} parent=1 // pred_region
      %46 = dma.done [#allocation6], 1024
    $region29: #{tpu_custom_call.1} parent=1 // pred_fallthru
      _
    %v48 = vld [vmem:[#allocation2] sm:$0x3]
    %vm49 = vcmask 1041408
    %v50 = vsel %vm49, %v48, 0.0
    %51 = vadd.xlane.f32.xlu0 %v50
    %v52 = vpop.xlane.xlu0 %51
    %v53 = vmul.f32 %v48, %v48
    %v54 = vsel %vm49, %v53, 0.0
    %55 = vadd.xlane.f32.xlu0 %v54
    %v56 = vpop.xlane.xlu0 %55
    %v57 = vmul.f32 %v52, 0.0078125
    %v58 = vmul.f32 %v56, 0.0078125
    %v59 = vmul.f32 %v57, %v57
    %v60 = vsub.f32 %v58, %v59
    %v61 = vmax.f32 %v60, 0.0
    %v62 = vsub.f32 %v48, %v57
    %v63 = vadd.f32 %v61, 1e-05
    %v64 = vrsqrt.pop %v63
    %v65 = vmul.f32 %v62, %v64
    %v66 = vld [vmem:[%s1] sm:$0x1]
    %v68 = vlaneseq
    %v69 = vshrl.u32 %v68, 7
    %v70 = vsub.s32 0, %v69
    %v71 = vrot.slane %v66, %v70
    %v73 = vmul.f32 %v65, %v71
    %v74 = vld [vmem:[%s2] sm:$0x1]
    %v76 = vlaneseq
    %v77 = vshrl.u32 %v76, 7
    %v78 = vsub.s32 0, %v77
    %v79 = vrot.slane %v74, %v78
    %v81 = vadd.f32 %v73, %v79
    %v82 = vpack.c.bf16 %v81, %v81
    %v83 = vld [vmem:[#allocation5] sm:$0xf]
    %v84 = vld [vmem:[#allocation5 + $0x4] sm:$0xf]
    %v85 = vld [vmem:[#allocation5 + $0x8] sm:$0xf]
    %v86 = vld [vmem:[#allocation5 + $0xc] sm:$0xf]
    %v87 = vld [vmem:[#allocation5 + $0x10] sm:$0xf]
    %v88 = vld [vmem:[#allocation5 + $0x14] sm:$0xf]
    %v89 = vld [vmem:[#allocation5 + $0x18] sm:$0xf]
    %v90 = vld [vmem:[#allocation5 + $0x1c] sm:$0xf]
    %v91 = vld [vmem:[#allocation5 + $0x20] sm:$0xf]
    %v92 = vld [vmem:[#allocation5 + $0x24] sm:$0xf]
    %v93 = vld [vmem:[#allocation5 + $0x28] sm:$0xf]
    %v94 = vld [vmem:[#allocation5 + $0x2c] sm:$0xf]
    %v95 = vld [vmem:[#allocation5 + $0x30] sm:$0xf]
    %v96 = vld [vmem:[#allocation5 + $0x34] sm:$0xf]
    %v97 = vld [vmem:[#allocation5 + $0x38] sm:$0xf]
    %v98 = vld [vmem:[#allocation5 + $0x3c] sm:$0xf]
    %v99 = vld [vmem:[%s4] sm:$0x1]
    %v101 = vlaneseq
    %v102 = vshrl.u32 %v101, 7
    %v103 = vsub.s32 0, %v102
    %v104 = vrot.slane %v99, %v103
    %v122 = vunpack.c.l.b16 %v83
    %v123 = vunpack.c.l.b16 %v84
    %v124 = vunpack.c.l.b16 %v85
    %v125 = vunpack.c.l.b16 %v86
    %v126 = vunpack.c.l.b16 %v87
    %v127 = vunpack.c.l.b16 %v88
    %v128 = vunpack.c.l.b16 %v89
    %v129 = vunpack.c.l.b16 %v90
    %v130 = vunpack.c.l.b16 %v91
    %v131 = vunpack.c.l.b16 %v92
    %v132 = vunpack.c.l.b16 %v93
    %v133 = vunpack.c.l.b16 %v94
    %v134 = vunpack.c.l.b16 %v95
    %v135 = vunpack.c.l.b16 %v96
    %v136 = vunpack.c.l.b16 %v97
    %v137 = vunpack.c.l.b16 %v98
    %v138 = vpack.c.b16 %v123, %v122
    %v139 = vpack.c.b16 %v125, %v124
    %v140 = vpack.c.b16 %v127, %v126
    %v141 = vpack.c.b16 %v129, %v128
    %v142 = vpack.c.b16 %v131, %v130
    %v143 = vpack.c.b16 %v133, %v132
    %v144 = vpack.c.b16 %v135, %v134
    %v145 = vpack.c.b16 %v137, %v136
    %154 = vmatprep.subr.bf16.mxu0 0
    %155 = vmatpush1.bf16.msra.mxu0 %v138
    %156 = vmatprep.subr.bf16.mxu0 0
    %157 = vmatpush1.bf16.msra.mxu0 %v139
    %158 = vmatprep.subr.bf16.mxu0 0
    %159 = vmatpush1.bf16.msra.mxu0 %v140
    %160 = vmatprep.subr.bf16.mxu0 0
    %161 = vmatpush1.bf16.msra.mxu0 %v141
    %162 = vmatprep.subr.bf16.mxu0 0
    %163 = vmatpush1.bf16.msra.mxu0 %v142
    %164 = vmatprep.subr.bf16.mxu0 0
    %165 = vmatpush1.bf16.msra.mxu0 %v143
    %166 = vmatprep.subr.bf16.mxu0 0
    %167 = vmatpush1.bf16.msra.mxu0 %v144
    %168 = vmatprep.subr.bf16.mxu0 0
    %169 = vmatpush1.bf16.msra.mxu0 %v145
    %170 = vmatprep.subr.bf16.mxu0 0
    %171 = vmatpush1.bf16.msra.mxu0 0
    %172 = vmatprep.subr.bf16.mxu0 0
    %173 = vmatpush1.bf16.msra.mxu0 0
    %174 = vmatprep.subr.bf16.mxu0 0
    %175 = vmatpush1.bf16.msra.mxu0 0
    %176 = vmatprep.subr.bf16.mxu0 0
    %177 = vmatpush1.bf16.msra.mxu0 0
    %178 = vmatprep.subr.bf16.mxu0 0
    %179 = vmatpush1.bf16.msra.mxu0 0
    %180 = vmatprep.subr.bf16.mxu0 0
    %181 = vmatpush1.bf16.msra.mxu0 0
    %182 = vmatprep.subr.bf16.mxu0 0
    %183 = vmatpush1.bf16.msra.mxu0 0
    %184 = vmatprep.subr.bf16.mxu0 0
    %185 = vmatpush1.bf16.msra.mxu0 0
    %186 = vmatprep.mubr.bf16.mxu0 0
    %187 = vmatmul.mubr.bf16.gmra.mrb[0].mxu0 %v82
    %v188 = vpop.f32.mrb[0].mxu0
    %v189 = vadd.f32 %v104, %v188
    %v190 = vpop.f32.mrb[0].mxu0
    %v191 = vpop.f32.mrb[0].mxu0
    %v192 = vpop.f32.mrb[0].mxu0
    %193 = vdwg.mxu0
    %194 = vst [vmem:[#allocation7] sm:$0x3] %v189
    // Predicated region
    $region30: #{tpu_custom_call.1} parent=1 // pred_check
      _
    $region31: #{tpu_custom_call.1} parent=1 // pred_check_branch
      %196 = sbr.rel (0) target = $region33
    $region32: #{tpu_custom_call.1} parent=1 // pred_region
      %s198 = ssub.s32 32, 32
      %199 = vsyncadd [#allocation4], %s198
      %s201 = sshll.u32 [#allocation7], 4
      %s202 = int_to_ptr.vmem [resolvable:$true] %s201
      %204 = dma.vmem_to_hbm [thread:$0]  %s202, 32, %s5, [#allocation4]
    $region33: #{tpu_custom_call.1} parent=1 // pred_fallthru
      _
    // Predicated region
    $region34: #{tpu_custom_call.1} parent=1 // pred_check
      _
    $region35: #{tpu_custom_call.1} parent=1 // pred_check_branch
      %206 = sbr.rel (0) target = $region37
    $region36: #{tpu_custom_call.1} parent=1 // pred_region
      %207 = dma.done [#allocation4], 32
    $region37: #{tpu_custom_call.1} parent=1 // pred_fallthru
      _
    %208 = vsyncpa [#allocation3], 1
    %209 = vsyncpa [#allocation6], 1
    %210 = vsyncpa [#allocation4], 1

</llo_original>
